<compile_context>
chip_gen: v5e
topology: v5e:2x2
jax: 0.10.0
libtpu: 0.0.40
codegen_flags: <defaults>
</compile_context>

<pallas_src>
import math

import jax
import jax.numpy as jnp
from jax.experimental import pallas as pl
from jax.experimental.pallas import tpu as pltpu


def _round_up(a: int, b: int) -> int:
    return (a + b - 1) // b * b


def _vmem_capacity_bytes() -> int:
    """Physical VMEM of the attached TPU; conservative fallback (v7x = 64 MiB)."""
    try:
        return int(pltpu.get_tpu_info().vmem_capacity_bytes)
    except Exception:
        return 64 * 1024 * 1024


# ---------------------------------------------------------------------------
# Kernel bodies: one (i, k) grid step of  out[i] += Graph[i, k] @ support[k].
# ---------------------------------------------------------------------------

def _hgnn_kernel_f32_out(g_ref, s_ref, b_ref, o_ref):
    """float32 output: accumulate directly into the resident output block."""
    k = pl.program_id(1)

    @pl.when(k == 0)
    def _init():
        o_ref[...] = jnp.zeros_like(o_ref)

    o_ref[...] += jnp.dot(g_ref[...], s_ref[...],
                          preferred_element_type=jnp.float32)

    @pl.when(k == pl.num_programs(1) - 1)
    def _finalize():
        o_ref[...] += b_ref[...].astype(o_ref.dtype)


def _hgnn_kernel_acc(g_ref, s_ref, b_ref, o_ref, acc_ref):
    """Non-f32 output: f32 VMEM scratch accumulator, cast on the last k-step."""
    k = pl.program_id(1)

    @pl.when(k == 0)
    def _init():
        acc_ref[...] = jnp.zeros_like(acc_ref)

    acc_ref[...] += jnp.dot(g_ref[...], s_ref[...],
                            preferred_element_type=jnp.float32)

    @pl.when(k == pl.num_programs(1) - 1)
    def _finalize():
        o_ref[...] = (acc_ref[...] + b_ref[...]).astype(o_ref.dtype)


# ---------------------------------------------------------------------------
# Wrapper
# ---------------------------------------------------------------------------

def hgnn_conv(x, w, g, b=None, *, tm=None, tk=None,
              compute_dtype=jnp.bfloat16):
    """HGNN_conv forward: Graph @ (x @ w) + bias.

    compute_dtype: dtype Graph/support are streamed in (bf16 default = ~2x on
    the HBM-bound N^2 stream; jnp.float32 for exact PyTorch-f32 parity).
    """
    N, f_in = x.shape
    f_out = w.shape[1]
    out_dtype = x.dtype

    if b is None:
        b = jnp.zeros((f_out,), jnp.float32)

    # ---- generation-aware tile defaults ----------------------------------
    vmem_bytes = _vmem_capacity_bytes()
    if vmem_bytes >= 96 * 1024 * 1024:          # v5e / v6e: 128 MiB physical
        tm_d, tk_d = 1024, 4096
        vmem_cap = min(int(0.8 * vmem_bytes), 100 * 1024 * 1024)
    else:                                        # v7x: 64 MiB physical
        tm_d, tk_d = 512, 4096
        vmem_cap = int(0.8 * vmem_bytes)         # ~51 MiB headroom for Mosaic
    tm = tm_d if tm is None else tm
    tk = tk_d if tk is None else tk

    # ---- tile clamping & hardware alignment ------------------------------
    TM_ALIGN, TK_ALIGN = 16, 128
    # >= 2 row tiles so both v7x TensorCores get work on the "parallel" axis
    # (harmless on single-TC v5e/v6e).
    if N <= 2 * tm:
        tm = _round_up(pl.cdiv(N, 2), TM_ALIGN)
    tm = _round_up(max(TM_ALIGN, min(tm, _round_up(N, TM_ALIGN))), TM_ALIGN)
    tk = _round_up(max(TK_ALIGN, min(tk, _round_up(N, TK_ALIGN))), TK_ALIGN)

    f_out_p = _round_up(f_out, 128)              # lane-dense output
    n_m = _round_up(N, tm)                       # output / Graph rows
    n_k = _round_up(N, tk)                       # reduction (Graph cols)

    # ---- hoisted support = x @ w, boundary casts, padding ----------------
    support = jnp.dot(x, w, preferred_element_type=jnp.float32)
    support = jnp.pad(support, ((0, n_k - N), (0, f_out_p - f_out)))
    support = support.astype(compute_dtype)

    g_p = jnp.pad(g, ((0, n_m - N), (0, n_k - N))).astype(compute_dtype)
    b_p = jnp.pad(b.reshape(1, f_out).astype(jnp.float32),
                  ((0, 0), (0, f_out_p - f_out)))

    grid = (n_m // tm, n_k // tk)
    f32_out = jnp.dtype(out_dtype) == jnp.dtype(jnp.float32)

    # ---- VMEM budget (double-buffered tiles + optional scratch) ----------
    g_item = jnp.dtype(compute_dtype).itemsize
    out_item = jnp.dtype(out_dtype).itemsize
    est_vmem = (
        2 * tm * tk * g_item                      # Graph tile (dominant)
        + 2 * tk * f_out_p * g_item               # support tile
        + 2 * 1 * f_out_p * 4                     # bias (resident)
        + 2 * tm * f_out_p * out_item             # output tile
        + (0 if f32_out else tm * f_out_p * 4)    # f32 scratch accumulator
    )
    vmem_limit = int(min(max(2 * est_vmem, 32 * 1024 * 1024), vmem_cap))

    cost = pl.CostEstimate(
        flops=2 * n_m * n_k * f_out_p,
        transcendentals=0,
        bytes_accessed=(n_m * n_k * g_item                      # Graph, once
                        + (n_m // tm) * n_k * f_out_p * g_item  # support re-reads
                        + n_m * f_out_p * out_item              # output
                        + f_out_p * 4),                         # bias
    )

    in_specs = [
        pl.BlockSpec((tm, tk), lambda i, k: (i, k)),          # Graph tile
        pl.BlockSpec((tk, f_out_p), lambda i, k: (k, 0)),     # support follows k
        pl.BlockSpec((1, f_out_p), lambda i, k: (0, 0)),      # bias resident
    ]
    out_spec = pl.BlockSpec((tm, f_out_p), lambda i, k: (i, 0))  # resident over k

    kernel = _hgnn_kernel_f32_out if f32_out else _hgnn_kernel_acc
    scratch = [] if f32_out else [pltpu.VMEM((tm, f_out_p), jnp.float32)]

    out_p = pl.pallas_call(
        kernel,
        out_shape=jax.ShapeDtypeStruct((n_m, f_out_p), out_dtype),
        grid=grid,
        in_specs=in_specs,
        out_specs=out_spec,
        scratch_shapes=scratch,
        compiler_params=pltpu.CompilerParams(
            dimension_semantics=("parallel", "arbitrary"),
            vmem_limit_bytes=vmem_limit,
        ),
        cost_estimate=cost,
    )(g_p, support, b_p)

    # Strip row / lane padding.
    return out_p[:N, :f_out]


if __name__ == "__main__":
    # Small shapes consistent with HGNN_conv (N nodes, in_ft -> out_ft).
    # tm=tk=128 gives a 2x2 grid so the k-accumulation and init/finalize
    # branches are actually exercised.
    N, in_ft, out_ft = 256, 32, 64

    key = jax.random.PRNGKey(0)
    k_x, k_g, k_w, k_b = jax.random.split(key, 4)

    # reset_parameters(): uniform(-stdv, stdv) with stdv = 1/sqrt(out_ft).
    stdv = 1.0 / math.sqrt(out_ft)
    weight = jax.random.uniform(k_w, (in_ft, out_ft), jnp.float32, -stdv, stdv)
    bias = jax.random.uniform(k_b, (out_ft,), jnp.float32, -stdv, stdv)

    x = jax.random.normal(k_x, (N, in_ft), jnp.float32)
    g = jax.random.uniform(k_g, (N, N), jnp.float32)   # dense graph/incidence

    out = hgnn_conv(x, weight, g, bias, tm=128, tk=128)
    out = jax.block_until_ready(out)
    assert out.shape == (N, out_ft)

    # Reference mirroring the kernel's boundary-bf16 stream with f32 accumulate
    # (matches the PyTorch f32 forward to ~bf16 precision).
    support = jnp.dot(x, weight, preferred_element_type=jnp.float32)
    ref = jnp.dot(g.astype(jnp.bfloat16), support.astype(jnp.bfloat16),
                  preferred_element_type=jnp.float32) + bias
    assert jnp.allclose(out, ref, atol=1e-2, rtol=1e-2), "mismatch vs reference"

    print("KERNEL_OK")
</pallas_src>

<mosaic_0001>
module attributes {stable_mosaic.version = 11 : i64} {
  func.func @_hgnn_kernel_f32_out(%arg0: i32, %arg1: i32, %arg2: memref<128x128xbf16, #tpu.memory_space<vmem>>, %arg3: memref<128x128xbf16, #tpu.memory_space<vmem>>, %arg4: memref<1x128xf32, #tpu.memory_space<vmem>>, %arg5: memref<128x128xf32, #tpu.memory_space<vmem>>) attributes {dimension_semantics = [#tpu.dimension_semantics<parallel>, #tpu.dimension_semantics<arbitrary>], iteration_bounds = array<i64: 2, 2>, scalar_prefetch = 0 : i64, scratch_operands = 0 : i64, tpu.core_type = #tpu.core_type<tc>, window_params = [{transform_indices = @transform_0, window_bounds = array<i64: 128, 128>}, {transform_indices = @transform_1, window_bounds = array<i64: 128, 128>}, {pipeline_mode = #tpu.pipeline_mode<synchronous>, transform_indices = @transform_2, window_bounds = array<i64: 1, 128>}, {transform_indices = @transform_3, window_bounds = array<i64: 128, 128>}]} {
    %c0_i32 = arith.constant 0 : i32
    %0 = arith.cmpi eq, %arg1, %c0_i32 : i32
    %1 = arith.extui %0 : i1 to i32
    %c0_i32_0 = arith.constant 0 : i32
    %2 = arith.cmpi ne, %1, %c0_i32_0 : i32
    scf.if %2 {
      %cst_9 = arith.constant 0.000000e+00 : f32
      %12 = vector.broadcast %cst_9 : f32 to vector<128x128xf32>
      %c0_10 = arith.constant 0 : index
      %c0_11 = arith.constant 0 : index
      %13 = vector.load %arg5[%c0_10, %c0_11] : memref<128x128xf32, #tpu.memory_space<vmem>>, vector<128x128xf32>
      tpu.vector_store %arg5[%c0_10, %c0_11], %12 {strides = array<i32>} : memref<128x128xf32, #tpu.memory_space<vmem>>, vector<128x128xf32>,
    } else {
    }
    %c0 = arith.constant 0 : index
    %c0_1 = arith.constant 0 : index
    %3 = vector.load %arg5[%c0, %c0_1] : memref<128x128xf32, #tpu.memory_space<vmem>>, vector<128x128xf32>
    %c0_2 = arith.constant 0 : index
    %c0_3 = arith.constant 0 : index
    %4 = vector.load %arg2[%c0_2, %c0_3] : memref<128x128xbf16, #tpu.memory_space<vmem>>, vector<128x128xbf16>
    %c0_4 = arith.constant 0 : index
    %c0_5 = arith.constant 0 : index
    %5 = vector.load %arg3[%c0_4, %c0_5] : memref<128x128xbf16, #tpu.memory_space<vmem>>, vector<128x128xbf16>
    %cst = arith.constant dense<0.000000e+00> : vector<128x128xf32>
    %6 = tpu.matmul %4, %5, %cst {dimension_numbers = #tpu.dot_dimension_numbers<[1], [0], [0], [1], [0, 0, 1, 1], [], []>} : vector<128x128xbf16>, vector<128x128xbf16>, vector<128x128xf32> -> vector<128x128xf32>
    %7 = arith.addf %3, %6 : vector<128x128xf32>
    %c0_6 = arith.constant 0 : index
    %c0_7 = arith.constant 0 : index
    %8 = vector.load %arg5[%c0_6, %c0_7] : memref<128x128xf32, #tpu.memory_space<vmem>>, vector<128x128xf32>
    tpu.vector_store %arg5[%c0_6, %c0_7], %7 {strides = array<i32>} : memref<128x128xf32, #tpu.memory_space<vmem>>, vector<128x128xf32>,
    %c1_i32 = arith.constant 1 : i32
    %9 = arith.cmpi eq, %arg1, %c1_i32 : i32
    %10 = arith.extui %9 : i1 to i32
    %c0_i32_8 = arith.constant 0 : i32
    %11 = arith.cmpi ne, %10, %c0_i32_8 : i32
    scf.if %11 {
      %c0_9 = arith.constant 0 : index
      %c0_10 = arith.constant 0 : index
      %12 = vector.load %arg5[%c0_9, %c0_10] : memref<128x128xf32, #tpu.memory_space<vmem>>, vector<128x128xf32>
      %c0_11 = arith.constant 0 : index
      %c0_12 = arith.constant 0 : index
      %13 = vector.load %arg4[%c0_11, %c0_12] : memref<1x128xf32, #tpu.memory_space<vmem>>, vector<1x128xf32>
      %14 = vector.broadcast %13 : vector<1x128xf32> to vector<128x128xf32>
      %15 = arith.addf %12, %14 : vector<128x128xf32>
      %c0_13 = arith.constant 0 : index
      %c0_14 = arith.constant 0 : index
      %16 = vector.load %arg5[%c0_13, %c0_14] : memref<128x128xf32, #tpu.memory_space<vmem>>, vector<128x128xf32>
      tpu.vector_store %arg5[%c0_13, %c0_14], %15 {strides = array<i32>} : memref<128x128xf32, #tpu.memory_space<vmem>>, vector<128x128xf32>,
    } else {
    }
    return
  }
  func.func @transform_0(%arg0: i32, %arg1: i32) -> (i32, i32) {
    %c0_i32 = arith.constant 0 : i32
    return %arg0, %arg1 : i32, i32
  }
  func.func @transform_1(%arg0: i32, %arg1: i32) -> (i32, i32) {
    %c0_i32 = arith.constant 0 : i32
    %c0_i32_0 = arith.constant 0 : i32
    return %arg1, %c0_i32 : i32, i32
  }
  func.func @transform_2(%arg0: i32, %arg1: i32) -> (i32, i32) {
    %c0_i32 = arith.constant 0 : i32
    %c0_i32_0 = arith.constant 0 : i32
    %c0_i32_1 = arith.constant 0 : i32
    return %c0_i32, %c0_i32_0 : i32, i32
  }
  func.func @transform_3(%arg0: i32, %arg1: i32) -> (i32, i32) {
    %c0_i32 = arith.constant 0 : i32
    %c0_i32_0 = arith.constant 0 : i32
    return %arg0, %c0_i32 : i32, i32
  }
}

</mosaic_0001>

<llo_original>
// kernel: tpu_custom_call.1
$region0: #{tpu_custom_call.1}
  #allocation0 [shape = 'u32[]', space=smem, size = 0x4, offset = 0x4, fixed_abs, tag = 'smem constant byte address 0x4 - core index']
  #allocation1 [shape = 'u32[72,128]{1,0:T(1,128)}', space=vmem, size = 0x9000, scoped, tag = 'internal scratch']
  %s0 = inlined_call_operand.hbm [shape: bf16[256,256], index: 0, kind: input, shape index: {}]
  %s1 = inlined_call_operand.hbm [shape: bf16[256,128], index: 1, kind: input, shape index: {}]
  %s2 = inlined_call_operand.vmem [shape: f32[1,128], index: 2, kind: input, shape index: {}]
  %s3 = inlined_call_operand.hbm [shape: f32[256,128], index: 3, kind: output, shape index: {}]
  %s4 = sld [smem:[#allocation0]]
  $region61: #{tpu_custom_call.1} parent=0
    _
  %s6 = ssub.s32 1, %s4
  %s7 = scalar_select 0, %s6, %s4
  $region1: #{tpu_custom_call.1} parent=0
    #allocation2 [shape = 'u8[65536]{0}', space=vmem, size = 0x10000, scoped, tag = 'input window, operand 0']
    #allocation3 [shape = 's32[2]{0}', space=sflag, size = 0x8, scoped, tag = 'scoped memory for tpu_custom_call.1']
    #allocation4 [shape = 's32[2]{0}', space=sflag, size = 0x8, scoped, tag = 'scoped memory for tpu_custom_call.1']
    #allocation5 [shape = 'u8[65536]{0}', space=vmem, size = 0x10000, scoped, tag = 'input window, operand 1']
    #allocation6 [shape = 's32[2]{0}', space=sflag, size = 0x8, scoped, tag = 'scoped memory for tpu_custom_call.1']
    #allocation7 [shape = 'u8[131072]{0}', space=vmem, size = 0x20000, scoped, tag = 'output window, operand 0']
    %8 = vsyncpa [#allocation3], 0
    %s9 = scalar_lea.sflag [#allocation3], 1
    %10 = vsyncpa %s9, 0
    %11 = vsyncpa [#allocation6], 0
    %s12 = scalar_lea.sflag [#allocation6], 1
    %13 = vsyncpa %s12, 0
    %14 = vsyncpa [#allocation4], 0
    %s15 = scalar_lea.sflag [#allocation4], 1
    %16 = vsyncpa %s15, 0
    loop: start=0, step=1, limit=6
    $region2: #{tpu_custom_call.1} parent=1 // loop_pre_header
      _
    $region3: #{tpu_custom_call.1} parent=1 // loop_header
      %s18 = sphi 0, %s22
      %p19 = scmp.ge.s32.totalorder %s18, 6
      %s25 = sphi 0, %s37
      %s26 = sphi 0, %s33
      %s27 = sphi 0, %s25
      %s28 = sphi 0, %s26
      %s29 = sphi 0, %s27
      %s30 = sphi 0, %s28
      %s42 = sphi 0, %s44
      %s45 = sphi 0, %s42
      %s46 = sphi 0, %s45
      %s62 = sphi 0, %s46
      %s68 = sphi 0, %s70
      %s71 = sphi 0, %s68
      %s72 = sphi 0, %s71
      %s88 = sphi 0, %s72
      %s92 = sphi 0, %s92
      %s94 = sphi 0, %s92
      %s95 = sphi 0, %s94
      %s109 = sphi 0, %s95
      %s115 = sphi 0, %s117
      %s118 = sphi 0, %s115
      %s119 = sphi 0, %s118
      %s135 = sphi 0, %s119
    $region4: #{tpu_custom_call.1} parent=1 // loop_header_branch
      %21 = sbr.rel (%p19) target = $region8
    $region5: #{tpu_custom_call.1} parent=1 // loop_body
      %s23 = ssub.s32 %s18, 1
      %s24 = ssub.s32 %s18, 2
      %s31 = sadd.s32 1, %s26
      %p32 = scmp.ge.s32.totalorder %s31, 2
      %s33 = scalar_select %p32, 0, %s31
      %s34 = sadd.s32 1, %s25
      %s35 = scalar_select %p32, %s34, %s25
      %p36 = scmp.ge.s32.totalorder %s35, 2
      %s37 = scalar_select %p36, 0, %s35
      %s38 = ssub.s32 %s25, %s37
      %s39 = ssub.s32 %s26, %s33
      %s40 = sor.u32 %s38, %s39
      %p41 = scmp.eq.s32.totalorder %s40, 0
      %s43 = sadd.s32 %s42, 1
      %s44 = scalar_select %p41, %s42, %s43
      %p47 = pneg %p41
      %p48 = scmp.eq.s32.totalorder %s18, 3
      %p49 = por %p47, %p48
      %p50 = scmp.ne.s32.totalorder %s42, %s45
      %p51 = scmp.eq.s32.totalorder %s18, 0
      %p52 = por %p50, %p51
      %p53 = scmp.ne.s32.totalorder %s42, %s45
      %p54 = scmp.eq.s32.totalorder %s23, 3
      %p55 = por %p53, %p54
      %p56 = scmp.ne.s32.totalorder %s45, %s46
      %p57 = scmp.eq.s32.totalorder %s23, 0
      %p58 = por %p56, %p57
      %p59 = scmp.ne.s32.totalorder %s45, %s46
      %p60 = scmp.eq.s32.totalorder %s24, 3
      %p61 = por %p59, %p60
      %p63 = scmp.ne.s32.totalorder %s46, %s62
      %p64 = scmp.eq.s32.totalorder %s24, 0
      %p65 = por %p63, %p64
      %s66 = ssub.s32 %s26, %s33
      %p67 = scmp.eq.s32.totalorder %s66, 0
      %s69 = sadd.s32 %s68, 1
      %s70 = scalar_select %p67, %s68, %s69
      %p73 = pneg %p67
      %p74 = scmp.eq.s32.totalorder %s18, 3
      %p75 = por %p73, %p74
      %p76 = scmp.ne.s32.totalorder %s68, %s71
      %p77 = scmp.eq.s32.totalorder %s18, 0
      %p78 = por %p76, %p77
      %p79 = scmp.ne.s32.totalorder %s68, %s71
      %p80 = scmp.eq.s32.totalorder %s23, 3
      %p81 = por %p79, %p80
      %p82 = scmp.ne.s32.totalorder %s71, %s72
      %p83 = scmp.eq.s32.totalorder %s23, 0
      %p84 = por %p82, %p83
      %p85 = scmp.ne.s32.totalorder %s71, %s72
      %p86 = scmp.eq.s32.totalorder %s24, 3
      %p87 = por %p85, %p86
      %p89 = scmp.ne.s32.totalorder %s72, %s88
      %p90 = scmp.eq.s32.totalorder %s24, 0
      %p91 = por %p89, %p90
      %s93 = sadd.s32 %s92, 1
      %p96 = scmp.eq.s32.totalorder %s18, 3
      %p97 = scmp.ne.s32.totalorder %s92, %s94
      %p98 = scmp.eq.s32.totalorder %s18, 0
      %p99 = por %p97, %p98
      %p100 = scmp.ne.s32.totalorder %s92, %s94
      %p101 = scmp.eq.s32.totalorder %s23, 3
      %p102 = por %p100, %p101
      %p103 = scmp.ne.s32.totalorder %s94, %s95
      %p104 = scmp.eq.s32.totalorder %s23, 0
      %p105 = por %p103, %p104
      %p106 = scmp.ne.s32.totalorder %s94, %s95
      %p107 = scmp.eq.s32.totalorder %s24, 3
      %p108 = por %p106, %p107
      %p110 = scmp.ne.s32.totalorder %s95, %s109
      %p111 = scmp.eq.s32.totalorder %s24, 0
      %p112 = por %p110, %p111
      %s113 = ssub.s32 %s25, %s37
      %p114 = scmp.eq.s32.totalorder %s113, 0
      %s116 = sadd.s32 %s115, 1
      %s117 = scalar_select %p114, %s115, %s116
      %p120 = pneg %p114
      %p121 = scmp.eq.s32.totalorder %s18, 3
      %p122 = por %p120, %p121
      %p123 = scmp.ne.s32.totalorder %s115, %s118
      %p124 = scmp.eq.s32.totalorder %s18, 0
      %p125 = por %p123, %p124
      %p126 = scmp.ne.s32.totalorder %s115, %s118
      %p127 = scmp.eq.s32.totalorder %s23, 3
      %p128 = por %p126, %p127
      %p129 = scmp.ne.s32.totalorder %s118, %s119
      %p130 = scmp.eq.s32.totalorder %s23, 0
      %p131 = por %p129, %p130
      %p132 = scmp.ne.s32.totalorder %s118, %s119
      %p133 = scmp.eq.s32.totalorder %s24, 3
      %p134 = por %p132, %p133
      %p136 = scmp.ne.s32.totalorder %s119, %s135
      %p137 = scmp.eq.s32.totalorder %s24, 0
      %p138 = por %p136, %p137
      %p139 = scmp.le.s32.totalorder 1, %s18
      %p140 = scmp.lt.s32.totalorder %s18, 5
      %p141 = pnand %p139, %p140
      %p142 = pneg %p141
      // Predicated region
      $region9: #{tpu_custom_call.1} parent=5 // pred_check
        _
      $region10: #{tpu_custom_call.1} parent=5 // pred_check_branch
        %144 = sbr.rel (%p141) target = $region12
      $region11: #{tpu_custom_call.1} parent=5 // pred_region
        %s145 = ssub.s32 %s18, 1
        // Predicated region
        $region13: #{tpu_custom_call.1} parent=11 // pred_check
          %p146 = pneg %p105
        $region14: #{tpu_custom_call.1} parent=11 // pred_check_branch
          %148 = sbr.rel (%p146) target = $region16
        $region15: #{tpu_custom_call.1} parent=11 // pred_region
          _
        $region16: #{tpu_custom_call.1} parent=11 // pred_fallthru
          _
      $region12: #{tpu_custom_call.1} parent=5 // pred_fallthru
        _
      %p149 = scmp.lt.s32.totalorder %s18, 4
      // Predicated region
      $region17: #{tpu_custom_call.1} parent=5 // pred_check
        %p150 = pneg %p149
      $region18: #{tpu_custom_call.1} parent=5 // pred_check_branch
        %152 = sbr.rel (%p150) target = $region20
      $region19: #{tpu_custom_call.1} parent=5 // pred_region
        // Predicated region
        $region21: #{tpu_custom_call.1} parent=19 // pred_check
          %p153 = pneg %p52
        $region22: #{tpu_custom_call.1} parent=19 // pred_check_branch
          %155 = sbr.rel (%p153) target = $region24
        $region23: #{tpu_custom_call.1} parent=19 // pred_region
          %s156 = sand.u32 %s42, 1
          %s157 = scalar_lea.sflag [#allocation3], %s156
          %s158 = sand.u32 %s42, 1
          %s159 = smul.addr %s158, 64
          %s160 = scalar_lea.vmem [#allocation2], %s159
          %s161 = smul.u32 16, %s25
          %163 = vsyncadd %s157, 0
          %s164 = smul.addr %s161, 2
          %s165 = sadd.s32 %s26, %s164
          %s166 = smul.addr %s165, 4
          %s167 = scalar_lea.hbm %s0, %s166
          %s168 = sshll.u32 %s167, 4
          %s169 = int_to_ptr.hbm [resolvable:$true] %s168
          %s170 = sshll.u32 %s160, 4
          %s171 = int_to_ptr.vmem [resolvable:$true] %s170
          %176 = dma.hbm_to_vmem [thread:$0]  %s169, 1024, %s171, %s157, 128, 64, 4
        $region24: #{tpu_custom_call.1} parent=19 // pred_fallthru
          _
        // Predicated region
        $region25: #{tpu_custom_call.1} parent=19 // pred_check
          %p177 = pneg %p78
        $region26: #{tpu_custom_call.1} parent=19 // pred_check_branch
          %179 = sbr.rel (%p177) target = $region28
        $region27: #{tpu_custom_call.1} parent=19 // pred_region
          %s180 = sand.u32 %s68, 1
          %s181 = scalar_lea.sflag [#allocation6], %s180
          %s182 = sand.u32 %s68, 1
          %s183 = smul.addr %s182, 64
          %s184 = scalar_lea.vmem [#allocation5], %s183
          %s185 = smul.u32 16, %s26
          %187 = vsyncadd %s181, 0
          %s188 = smul.addr %s185, 4
          %s189 = scalar_lea.hbm %s1, %s188
          %s190 = sshll.u32 %s189, 4
          %s191 = int_to_ptr.hbm [resolvable:$true] %s190
          %s192 = sshll.u32 %s184, 4
          %s193 = int_to_ptr.vmem [resolvable:$true] %s192
          %198 = dma.hbm_to_vmem [thread:$0]  %s191, 1024, %s193, %s181, 64, 64, 4
        $region28: #{tpu_custom_call.1} parent=19 // pred_fallthru
          _
      $region20: #{tpu_custom_call.1} parent=5 // pred_fallthru
        _
      %p199 = scmp.le.s32.totalorder 1, %s18
      %p200 = scmp.lt.s32.totalorder %s18, 5
      %p201 = pnand %p199, %p200
      %p202 = pneg %p201
      // Predicated region
      $region29: #{tpu_custom_call.1} parent=5 // pred_check
        _
      $region30: #{tpu_custom_call.1} parent=5 // pred_check_branch
        %204 = sbr.rel (%p201) target = $region32
      $region31: #{tpu_custom_call.1} parent=5 // pred_region
        %s205 = ssub.s32 %s18, 1
        %s206 = sand.u32 %s45, 1
        %s207 = scalar_lea.sflag [#allocation3], %s206
        %s208 = sand.u32 %s45, 1
        %s209 = smul.addr %s208, 64
        %s210 = scalar_lea.vmem [#allocation2], %s209
        // Predicated region
        $region33: #{tpu_custom_call.1} parent=31 // pred_check
          %p211 = pneg %p58
        $region34: #{tpu_custom_call.1} parent=31 // pred_check_branch
          %213 = sbr.rel (%p211) target = $region36
        $region35: #{tpu_custom_call.1} parent=31 // pred_region
          %215 = dma.done %s207, 1024
        $region36: #{tpu_custom_call.1} parent=31 // pred_fallthru
          _
        %s216 = sand.u32 %s71, 1
        %s217 = scalar_lea.sflag [#allocation6], %s216
        %s218 = sand.u32 %s71, 1
        %s219 = smul.addr %s218, 64
        %s220 = scalar_lea.vmem [#allocation5], %s219
        // Predicated region
        $region37: #{tpu_custom_call.1} parent=31 // pred_check
          %p221 = pneg %p84
        $region38: #{tpu_custom_call.1} parent=31 // pred_check_branch
          %223 = sbr.rel (%p221) target = $region40
        $region39: #{tpu_custom_call.1} parent=31 // pred_region
          %225 = dma.done %s217, 1024
        $region40: #{tpu_custom_call.1} parent=31 // pred_fallthru
          _
        %s226 = sand.u32 %s45, 1
        %s227 = scalar_lea.sflag [#allocation3], %s226
        %s228 = sand.u32 %s45, 1
        %s229 = smul.addr %s228, 64
        %s230 = scalar_lea.vmem [#allocation2], %s229
        %p231 = pneg %p58
        %p232 = pneg %p55
        %s233 = sand.u32 %s71, 1
        %s234 = scalar_lea.sflag [#allocation6], %s233
        %s235 = sand.u32 %s71, 1
        %s236 = smul.addr %s235, 64
        %s237 = scalar_lea.vmem [#allocation5], %s236
        %p238 = pneg %p84
        %p239 = pneg %p81
        %p240 = pneg %p105
        %p241 = pneg %p102
        %p242 = pneg %p131
        %p243 = pneg %p128
        %s244 = sand.u32 %s118, 1
        %s245 = scalar_lea.sflag [#allocation4], %s244
        %s246 = sand.u32 %s118, 1
        %s247 = smul.addr %s246, 128
        %s248 = scalar_lea.vmem [#allocation7], %s247
        %s249 = smul.u32 16, %s27
        %s250 = smul.u32 16, %s28
        %s251 = smul.u32 16, %s27
        %p252 = scmp.eq.s32.totalorder %s28, 0
        // Predicated region
        $region41: #{tpu_custom_call.1} parent=31 // pred_check
          %p253 = pneg %p252
        $region42: #{tpu_custom_call.1} parent=31 // pred_check_branch
          %255 = sbr.rel (%p253) target = $region44
        $region43: #{tpu_custom_call.1} parent=31 // pred_region
          %256 = vst [vmem:[%s248] sm:$0xff] 0.0
          %257 = vst [vmem:[%s248 + $0x8] sm:$0xff] 0.0
          %258 = vst [vmem:[%s248 + $0x10] sm:$0xff] 0.0
          %259 = vst [vmem:[%s248 + $0x18] sm:$0xff] 0.0
          %260 = vst [vmem:[%s248 + $0x20] sm:$0xff] 0.0
          %261 = vst [vmem:[%s248 + $0x28] sm:$0xff] 0.0
          %262 = vst [vmem:[%s248 + $0x30] sm:$0xff] 0.0
          %263 = vst [vmem:[%s248 + $0x38] sm:$0xff] 0.0
          %264 = vst [vmem:[%s248 + $0x40] sm:$0xff] 0.0
          %265 = vst [vmem:[%s248 + $0x48] sm:$0xff] 0.0
          %266 = vst [vmem:[%s248 + $0x50] sm:$0xff] 0.0
          %267 = vst [vmem:[%s248 + $0x58] sm:$0xff] 0.0
          %268 = vst [vmem:[%s248 + $0x60] sm:$0xff] 0.0
          %269 = vst [vmem:[%s248 + $0x68] sm:$0xff] 0.0
          %270 = vst [vmem:[%s248 + $0x70] sm:$0xff] 0.0
          %271 = vst [vmem:[%s248 + $0x78] sm:$0xff] 0.0
        $region44: #{tpu_custom_call.1} parent=31 // pred_fallthru
          _
        %v272 = vld [vmem:[%s248] sm:$0xff]
        %v273 = vld [vmem:[%s248 + $0x8] sm:$0xff]
        %v274 = vld [vmem:[%s248 + $0x10] sm:$0xff]
        %v275 = vld [vmem:[%s248 + $0x18] sm:$0xff]
        %v276 = vld [vmem:[%s248 + $0x20] sm:$0xff]
        %v277 = vld [vmem:[%s248 + $0x28] sm:$0xff]
        %v278 = vld [vmem:[%s248 + $0x30] sm:$0xff]
        %v279 = vld [vmem:[%s248 + $0x38] sm:$0xff]
        %v280 = vld [vmem:[%s248 + $0x40] sm:$0xff]
        %v281 = vld [vmem:[%s248 + $0x48] sm:$0xff]
        %v282 = vld [vmem:[%s248 + $0x50] sm:$0xff]
        %v283 = vld [vmem:[%s248 + $0x58] sm:$0xff]
        %v284 = vld [vmem:[%s248 + $0x60] sm:$0xff]
        %v285 = vld [vmem:[%s248 + $0x68] sm:$0xff]
        %v286 = vld [vmem:[%s248 + $0x70] sm:$0xff]
        %v287 = vld [vmem:[%s248 + $0x78] sm:$0xff]
        %v288 = vld [vmem:[%s210] sm:$0xf]
        %v289 = vld [vmem:[%s210 + $0x4] sm:$0xf]
        %v290 = vld [vmem:[%s210 + $0x8] sm:$0xf]
        %v291 = vld [vmem:[%s210 + $0xc] sm:$0xf]
        %v292 = vld [vmem:[%s210 + $0x10] sm:$0xf]
        %v293 = vld [vmem:[%s210 + $0x14] sm:$0xf]
        %v294 = vld [vmem:[%s210 + $0x18] sm:$0xf]
        %v295 = vld [vmem:[%s210 + $0x1c] sm:$0xf]
        %v296 = vld [vmem:[%s210 + $0x20] sm:$0xf]
        %v297 = vld [vmem:[%s210 + $0x24] sm:$0xf]
        %v298 = vld [vmem:[%s210 + $0x28] sm:$0xf]
        %v299 = vld [vmem:[%s210 + $0x2c] sm:$0xf]
        %v300 = vld [vmem:[%s210 + $0x30] sm:$0xf]
        %v301 = vld [vmem:[%s210 + $0x34] sm:$0xf]
        %v302 = vld [vmem:[%s210 + $0x38] sm:$0xf]
        %v303 = vld [vmem:[%s210 + $0x3c] sm:$0xf]
        %v304 = vld [vmem:[%s220] sm:$0xf]
        %v305 = vld [vmem:[%s220 + $0x4] sm:$0xf]
        %v306 = vld [vmem:[%s220 + $0x8] sm:$0xf]
        %v307 = vld [vmem:[%s220 + $0xc] sm:$0xf]
        %v308 = vld [vmem:[%s220 + $0x10] sm:$0xf]
        %v309 = vld [vmem:[%s220 + $0x14] sm:$0xf]
        %v310 = vld [vmem:[%s220 + $0x18] sm:$0xf]
        %v311 = vld [vmem:[%s220 + $0x1c] sm:$0xf]
        %v312 = vld [vmem:[%s220 + $0x20] sm:$0xf]
        %v313 = vld [vmem:[%s220 + $0x24] sm:$0xf]
        %v314 = vld [vmem:[%s220 + $0x28] sm:$0xf]
        %v315 = vld [vmem:[%s220 + $0x2c] sm:$0xf]
        %v316 = vld [vmem:[%s220 + $0x30] sm:$0xf]
        %v317 = vld [vmem:[%s220 + $0x34] sm:$0xf]
        %v318 = vld [vmem:[%s220 + $0x38] sm:$0xf]
        %v319 = vld [vmem:[%s220 + $0x3c] sm:$0xf]
        %v336 = vunpack.c.l.b16 %v288
        %v337 = vunpack.c.l.b16 %v289
        %v338 = vunpack.c.l.b16 %v290
        %v339 = vunpack.c.l.b16 %v291
        %v340 = vunpack.c.l.b16 %v292
        %v341 = vunpack.c.l.b16 %v293
        %v342 = vunpack.c.l.b16 %v294
        %v343 = vunpack.c.l.b16 %v295
        %v344 = vunpack.c.l.b16 %v296
        %v345 = vunpack.c.l.b16 %v297
        %v346 = vunpack.c.l.b16 %v298
        %v347 = vunpack.c.l.b16 %v299
        %v348 = vunpack.c.l.b16 %v300
        %v349 = vunpack.c.l.b16 %v301
        %v350 = vunpack.c.l.b16 %v302
        %v351 = vunpack.c.l.b16 %v303
        %v352 = vpack.c.b16 %v337, %v336
        %v353 = vpack.c.b16 %v339, %v338
        %v354 = vpack.c.b16 %v341, %v340
        %v355 = vpack.c.b16 %v343, %v342
        %v356 = vpack.c.b16 %v345, %v344
        %v357 = vpack.c.b16 %v347, %v346
        %v358 = vpack.c.b16 %v349, %v348
        %v359 = vpack.c.b16 %v351, %v350
        %v384 = vunpack.c.l.b16 %v304
        %v385 = vunpack.c.l.b16 %v305
        %v386 = vunpack.c.l.b16 %v306
        %v387 = vunpack.c.l.b16 %v307
        %v388 = vunpack.c.l.b16 %v308
        %v389 = vunpack.c.l.b16 %v309
        %v390 = vunpack.c.l.b16 %v310
        %v391 = vunpack.c.l.b16 %v311
        %v392 = vunpack.c.l.b16 %v312
        %v393 = vunpack.c.l.b16 %v313
        %v394 = vunpack.c.l.b16 %v314
        %v395 = vunpack.c.l.b16 %v315
        %v396 = vunpack.c.l.b16 %v316
        %v397 = vunpack.c.l.b16 %v317
        %v398 = vunpack.c.l.b16 %v318
        %v399 = vunpack.c.l.b16 %v319
        %v400 = vpack.c.b16 %v385, %v384
        %v401 = vpack.c.b16 %v387, %v386
        %v402 = vpack.c.b16 %v389, %v388
        %v403 = vpack.c.b16 %v391, %v390
        %v404 = vpack.c.b16 %v393, %v392
        %v405 = vpack.c.b16 %v395, %v394
        %v406 = vpack.c.b16 %v397, %v396
        %v407 = vpack.c.b16 %v399, %v398
        %416 = vmatpush.bf16.msra.mxu0 %v407
        %417 = vmatpush.bf16.msra.mxu0 %v406
        %418 = vmatpush.bf16.msra.mxu0 %v405
        %419 = vmatpush.bf16.msra.mxu0 %v404
        %420 = vmatpush.bf16.msra.mxu0 %v403
        %421 = vmatpush.bf16.msra.mxu0 %v402
        %422 = vmatpush.bf16.msra.mxu0 %v401
        %423 = vmatpush.bf16.msra.mxu0 %v400
        %424 = vmatmul.bf16.gmra.mxu0 %v352
        %v425 = vpop.f32.mrf.mxu0
        %v426 = vadd.f32 0.0, %v425
        %v427 = vpop.f32.mrf.mxu0
        %v428 = vadd.f32 0.0, %v427
        %429 = vmatmul.bf16.gmra.mxu0 %v353
        %v430 = vpop.f32.mrf.mxu0
        %v431 = vadd.f32 0.0, %v430
        %v432 = vpop.f32.mrf.mxu0
        %v433 = vadd.f32 0.0, %v432
        %434 = vmatmul.bf16.gmra.mxu0 %v354
        %v435 = vpop.f32.mrf.mxu0
        %v436 = vadd.f32 0.0, %v435
        %v437 = vpop.f32.mrf.mxu0
        %v438 = vadd.f32 0.0, %v437
        %439 = vmatmul.bf16.gmra.mxu0 %v355
        %v440 = vpop.f32.mrf.mxu0
        %v441 = vadd.f32 0.0, %v440
        %v442 = vpop.f32.mrf.mxu0
        %v443 = vadd.f32 0.0, %v442
        %444 = vmatmul.bf16.gmra.mxu0 %v356
        %v445 = vpop.f32.mrf.mxu0
        %v446 = vadd.f32 0.0, %v445
        %v447 = vpop.f32.mrf.mxu0
        %v448 = vadd.f32 0.0, %v447
        %449 = vmatmul.bf16.gmra.mxu0 %v357
        %v450 = vpop.f32.mrf.mxu0
        %v451 = vadd.f32 0.0, %v450
        %v452 = vpop.f32.mrf.mxu0
        %v453 = vadd.f32 0.0, %v452
        %454 = vmatmul.bf16.gmra.mxu0 %v358
        %v455 = vpop.f32.mrf.mxu0
        %v456 = vadd.f32 0.0, %v455
        %v457 = vpop.f32.mrf.mxu0
        %v458 = vadd.f32 0.0, %v457
        %459 = vmatmul.bf16.gmra.mxu0 %v359
        %v460 = vpop.f32.mrf.mxu0
        %v461 = vadd.f32 0.0, %v460
        %v462 = vpop.f32.mrf.mxu0
        %v463 = vadd.f32 0.0, %v462
        %464 = vdwg.mxu0
        %v465 = vadd.f32 %v272, %v426
        %v466 = vadd.f32 %v273, %v428
        %v467 = vadd.f32 %v274, %v431
        %v468 = vadd.f32 %v275, %v433
        %v469 = vadd.f32 %v276, %v436
        %v470 = vadd.f32 %v277, %v438
        %v471 = vadd.f32 %v278, %v441
        %v472 = vadd.f32 %v279, %v443
        %v473 = vadd.f32 %v280, %v446
        %v474 = vadd.f32 %v281, %v448
        %v475 = vadd.f32 %v282, %v451
        %v476 = vadd.f32 %v283, %v453
        %v477 = vadd.f32 %v284, %v456
        %v478 = vadd.f32 %v285, %v458
        %v479 = vadd.f32 %v286, %v461
        %v480 = vadd.f32 %v287, %v463
        %481 = vst [vmem:[%s248] sm:$0xff] %v465
        %482 = vst [vmem:[%s248 + $0x8] sm:$0xff] %v466
        %483 = vst [vmem:[%s248 + $0x10] sm:$0xff] %v467
        %484 = vst [vmem:[%s248 + $0x18] sm:$0xff] %v468
        %485 = vst [vmem:[%s248 + $0x20] sm:$0xff] %v469
        %486 = vst [vmem:[%s248 + $0x28] sm:$0xff] %v470
        %487 = vst [vmem:[%s248 + $0x30] sm:$0xff] %v471
        %488 = vst [vmem:[%s248 + $0x38] sm:$0xff] %v472
        %489 = vst [vmem:[%s248 + $0x40] sm:$0xff] %v473
        %490 = vst [vmem:[%s248 + $0x48] sm:$0xff] %v474
        %491 = vst [vmem:[%s248 + $0x50] sm:$0xff] %v475
        %492 = vst [vmem:[%s248 + $0x58] sm:$0xff] %v476
        %493 = vst [vmem:[%s248 + $0x60] sm:$0xff] %v477
        %494 = vst [vmem:[%s248 + $0x68] sm:$0xff] %v478
        %495 = vst [vmem:[%s248 + $0x70] sm:$0xff] %v479
        %496 = vst [vmem:[%s248 + $0x78] sm:$0xff] %v480
        %p497 = scmp.eq.s32.totalorder %s28, 1
        // Predicated region
        $region45: #{tpu_custom_call.1} parent=31 // pred_check
          %p498 = pneg %p497
        $region46: #{tpu_custom_call.1} parent=31 // pred_check_branch
          %500 = sbr.rel (%p498) target = $region48
        $region47: #{tpu_custom_call.1} parent=31 // pred_region
          %v501 = vld [vmem:[%s248] sm:$0xff]
          %v502 = vld [vmem:[%s248 + $0x8] sm:$0xff]
          %v503 = vld [vmem:[%s248 + $0x10] sm:$0xff]
          %v504 = vld [vmem:[%s248 + $0x18] sm:$0xff]
          %v505 = vld [vmem:[%s248 + $0x20] sm:$0xff]
          %v506 = vld [vmem:[%s248 + $0x28] sm:$0xff]
          %v507 = vld [vmem:[%s248 + $0x30] sm:$0xff]
          %v508 = vld [vmem:[%s248 + $0x38] sm:$0xff]
          %v509 = vld [vmem:[%s248 + $0x40] sm:$0xff]
          %v510 = vld [vmem:[%s248 + $0x48] sm:$0xff]
          %v511 = vld [vmem:[%s248 + $0x50] sm:$0xff]
          %v512 = vld [vmem:[%s248 + $0x58] sm:$0xff]
          %v513 = vld [vmem:[%s248 + $0x60] sm:$0xff]
          %v514 = vld [vmem:[%s248 + $0x68] sm:$0xff]
          %v515 = vld [vmem:[%s248 + $0x70] sm:$0xff]
          %v516 = vld [vmem:[%s248 + $0x78] sm:$0xff]
          %v517 = vld [vmem:[%s2] sm:$0x1]
          %v519 = vperm.slane %v517, 0
          %v521 = vadd.f32 %v501, %v519
          %v522 = vadd.f32 %v502, %v519
          %v523 = vadd.f32 %v503, %v519
          %v524 = vadd.f32 %v504, %v519
          %v525 = vadd.f32 %v505, %v519
          %v526 = vadd.f32 %v506, %v519
          %v527 = vadd.f32 %v507, %v519
          %v528 = vadd.f32 %v508, %v519
          %v529 = vadd.f32 %v509, %v519
          %v530 = vadd.f32 %v510, %v519
          %v531 = vadd.f32 %v511, %v519
          %v532 = vadd.f32 %v512, %v519
          %v533 = vadd.f32 %v513, %v519
          %v534 = vadd.f32 %v514, %v519
          %v535 = vadd.f32 %v515, %v519
          %v536 = vadd.f32 %v516, %v519
          %537 = vst [vmem:[%s248] sm:$0xff] %v521
          %538 = vst [vmem:[%s248 + $0x8] sm:$0xff] %v522
          %539 = vst [vmem:[%s248 + $0x10] sm:$0xff] %v523
          %540 = vst [vmem:[%s248 + $0x18] sm:$0xff] %v524
          %541 = vst [vmem:[%s248 + $0x20] sm:$0xff] %v525
          %542 = vst [vmem:[%s248 + $0x28] sm:$0xff] %v526
          %543 = vst [vmem:[%s248 + $0x30] sm:$0xff] %v527
          %544 = vst [vmem:[%s248 + $0x38] sm:$0xff] %v528
          %545 = vst [vmem:[%s248 + $0x40] sm:$0xff] %v529
          %546 = vst [vmem:[%s248 + $0x48] sm:$0xff] %v530
          %547 = vst [vmem:[%s248 + $0x50] sm:$0xff] %v531
          %548 = vst [vmem:[%s248 + $0x58] sm:$0xff] %v532
          %549 = vst [vmem:[%s248 + $0x60] sm:$0xff] %v533
          %550 = vst [vmem:[%s248 + $0x68] sm:$0xff] %v534
          %551 = vst [vmem:[%s248 + $0x70] sm:$0xff] %v535
          %552 = vst [vmem:[%s248 + $0x78] sm:$0xff] %v536
        $region48: #{tpu_custom_call.1} parent=31 // pred_fallthru
          _
        %s553 = sand.u32 %s118, 1
        %s554 = scalar_lea.sflag [#allocation4], %s553
        %s555 = sand.u32 %s118, 1
        %s556 = smul.addr %s555, 128
        %s557 = scalar_lea.vmem [#allocation7], %s556
        // Predicated region
        $region49: #{tpu_custom_call.1} parent=31 // pred_check
          %p558 = pneg %p128
        $region50: #{tpu_custom_call.1} parent=31 // pred_check_branch
          %560 = sbr.rel (%p558) target = $region52
        $region51: #{tpu_custom_call.1} parent=31 // pred_region
          %s561 = smul.u32 16, %s27
          %563 = vsyncadd %s554, 0
          %s564 = smul.addr %s561, 8
          %s565 = scalar_lea.hbm %s3, %s564
          %s566 = sshll.u32 %s557, 4
          %s567 = int_to_ptr.vmem [resolvable:$true] %s566
          %s568 = sshll.u32 %s565, 4
          %s569 = int_to_ptr.hbm [resolvable:$true] %s568
          %574 = dma.vmem_to_hbm [thread:$0]  %s567, 2048, %s569, %s554, 128, 128, 8
        $region52: #{tpu_custom_call.1} parent=31 // pred_fallthru
          _
      $region32: #{tpu_custom_call.1} parent=5 // pred_fallthru
        _
      %p575 = scmp.le.s32.totalorder 2, %s18
      // Predicated region
      $region53: #{tpu_custom_call.1} parent=5 // pred_check
        %p576 = pneg %p575
      $region54: #{tpu_custom_call.1} parent=5 // pred_check_branch
        %578 = sbr.rel (%p576) target = $region56
      $region55: #{tpu_custom_call.1} parent=5 // pred_region
        %s579 = ssub.s32 %s18, 2
        // Predicated region
        $region57: #{tpu_custom_call.1} parent=55 // pred_check
          %p580 = pneg %p134
        $region58: #{tpu_custom_call.1} parent=55 // pred_check_branch
          %582 = sbr.rel (%p580) target = $region60
        $region59: #{tpu_custom_call.1} parent=55 // pred_region
          %s583 = sand.u32 %s119, 1
          %s584 = scalar_lea.sflag [#allocation4], %s583
          %s585 = sand.u32 %s119, 1
          %s586 = smul.addr %s585, 128
          %s587 = scalar_lea.vmem [#allocation7], %s586
          %589 = dma.done %s584, 2048
        $region60: #{tpu_custom_call.1} parent=55 // pred_fallthru
          _
      $region56: #{tpu_custom_call.1} parent=5 // pred_fallthru
        _
    $region6: #{tpu_custom_call.1} parent=1 // loop_footer
      %s22 = sadd.s32 1, %s18
    $region7: #{tpu_custom_call.1} parent=1 // loop_footer_branch
      %17 = sbr.rel target = $region3
    $region8: #{tpu_custom_call.1} parent=1 // loop_exit
      _
    %590 = vsyncpa [#allocation3], 1
    %s591 = scalar_lea.sflag [#allocation3], 1
    %592 = vsyncpa %s591, 1
    %593 = vsyncpa [#allocation6], 1
    %s594 = scalar_lea.sflag [#allocation6], 1
    %595 = vsyncpa %s594, 1
    %596 = vsyncpa [#allocation4], 1
    %s597 = scalar_lea.sflag [#allocation4], 1
    %598 = vsyncpa %s597, 1

</llo_original>
